<compile_context>
chip_gen: v5e
topology: v5e:2x2
jax: 0.10.0
libtpu: 0.0.40
codegen_flags: <defaults>
</compile_context>

<pallas_src>
import jax
import jax.numpy as jnp
from jax import lax
from jax.experimental import pallas as pl
from jax.experimental.pallas import tpu as pltpu


_LANES = 128
_SMALL_DIM = 8          # unrolled-VPU threshold for n_feature / n_out
_SINGLE_TILE_MAX = 256  # below this, one full block / no pad / no slice
_MAX_TB = 32768         # lane-tile upper bound for very large B


def _round_up(n: int, m: int) -> int:
    return ((n + m - 1) // m) * m


def _vmem_budget_bytes() -> int:
    """Per-step VMEM budget for tile sizing (gen-aware, conservatively capped
    at 16 MiB so it fits the *default* scoped VMEM on v5e/v6e/v7x)."""
    default = 16 * 1024 * 1024
    try:
        info = pltpu.get_tpu_info()
        cap = getattr(info, "vmem_capacity_bytes", None)
        if cap:
            return min(int(cap) // 4, default)
    except Exception:
        pass
    return default


def _make_kernel(n_feature: int, n_hidden: int, n_out: int):
    small_k = n_feature <= _SMALL_DIM
    small_n = n_out <= _SMALL_DIM

    def mlp_kernel(x_ref, w1_ref, b1_ref, w2_ref, b2_ref, o_ref):
        # x_ref : (n_feature, TB)        batch on lanes
        # w1_ref: (n_hidden, n_feature)  torch layout
        # b1_ref: (n_hidden, 1)
        # w2_ref: (n_hidden, n_out) if small_n else (n_out, n_hidden)
        # b2_ref: (n_out, 1)
        # o_ref : (n_out, TB)
        x = x_ref[...]
        w1 = w1_ref[...]

        if small_k:
            # Unrolled VPU outer-product accumulation over the tiny K axis.
            h = w1[:, 0:1] * x[0:1, :]
            for f in range(1, n_feature):
                h = h + w1[:, f:f + 1] * x[f:f + 1, :]
            h = h + b1_ref[...]
        else:
            h = jnp.dot(w1, x, preferred_element_type=jnp.float32) + b1_ref[...]

        h = jnp.maximum(h, 0.0)  # ReLU (VPU)

        if small_n:
            # Unrolled broadcast-mul + sublane (XLU) reduction per output row.
            w2t = w2_ref[...]            # (n_hidden, n_out)
            b2 = b2_ref[...]             # (n_out, 1)
            rows = []
            for j in range(n_out):
                rows.append(
                    jnp.sum(h * w2t[:, j:j + 1], axis=0, keepdims=True)
                    + b2[j:j + 1, :])
            o = rows[0] if n_out == 1 else jnp.concatenate(rows, axis=0)
        else:
            # (n_out, TB) = w2 @ h, contracting hidden; w2 stays untransposed.
            o = lax.dot_general(
                w2_ref[...], h,
                dimension_numbers=(((1,), (0,)), ((), ())),
                preferred_element_type=jnp.float32) + b2_ref[...]

        o_ref[...] = o.astype(o_ref.dtype)

    return mlp_kernel


@jax.jit
def net_forward(x, w1, b1, w2, b2):
    """Forward pass of Net.

    x:  (B, n_feature) float32
    w1: (n_hidden, n_feature), b1: (n_hidden,)   -- torch Linear layout
    w2: (n_out, n_hidden),     b2: (n_out,)      -- torch Linear layout
    Returns (B, n_out) float32.
    """
    B, n_feature = x.shape
    n_hidden = w1.shape[0]
    n_out = w2.shape[0]
    small_n = n_out <= _SMALL_DIM

    # Lane-transposed x (for n_feature==1 this is just a reshape in XLA).
    x_t = x.T.astype(jnp.float32)                        # (n_feature, B)
    w1_f = w1.astype(jnp.float32)                        # (n_hidden, n_feature)
    b1_col = b1.reshape(n_hidden, 1).astype(jnp.float32)
    # Small-n_out path wants column access -> tiny (n_hidden, n_out) transpose.
    # General path uses w2 untransposed and contracts dim 1.
    w2_k = (w2.T if small_n else w2).astype(jnp.float32)
    b2_col = b2.reshape(n_out, 1).astype(jnp.float32)

    if B <= _SINGLE_TILE_MAX:
        # Single full-array block: no padding, no output slice, grid=(1,).
        tb = B
        b_pad = B
        grid_b = 1
    else:
        # VMEM-budget-derived lane tile:
        #   streamed x/out blocks are double-buffered, hidden intermediate is
        #   (n_hidden, tb) f32 live in-kernel.
        per_lane_bytes = 4 * (2 * n_feature + 2 * n_out + n_hidden)
        tb = _vmem_budget_bytes() // max(per_lane_bytes, 1)
        tb = max(_LANES, (tb // _LANES) * _LANES)
        tb = min(tb, _MAX_TB)
        # Keep >= 2 grid steps so v7x's two TensorCores both get work.
        tb = min(tb, _round_up(-(-B // 2), _LANES))
        b_pad = _round_up(B, tb)
        grid_b = b_pad // tb
        if b_pad != B:
            x_t = jnp.pad(x_t, ((0, 0), (0, b_pad - B)))

    flops = b_pad * (2 * n_feature * n_hidden + 2 * n_hidden * n_out + n_hidden)
    bytes_accessed = 4 * (
        n_feature * b_pad + n_out * b_pad
        + n_hidden * n_feature + n_hidden + n_hidden * n_out + n_out)

    out_t = pl.pallas_call(
        _make_kernel(n_feature, n_hidden, n_out),
        out_shape=jax.ShapeDtypeStruct((n_out, b_pad), jnp.float32),
        grid=(grid_b,),
        in_specs=[
            pl.BlockSpec((n_feature, tb), lambda i: (0, i)),        # x (streamed)
            pl.BlockSpec((n_hidden, n_feature), lambda i: (0, 0)),  # w1
            pl.BlockSpec((n_hidden, 1), lambda i: (0, 0)),          # b1
            pl.BlockSpec(w2_k.shape, lambda i: (0, 0)),             # w2 (layout per path)
            pl.BlockSpec((n_out, 1), lambda i: (0, 0)),             # b2
        ],
        out_specs=pl.BlockSpec((n_out, tb), lambda i: (0, i)),
        compiler_params=pltpu.CompilerParams(
            dimension_semantics=("parallel",)),
        cost_estimate=pl.CostEstimate(
            flops=flops, transcendentals=0, bytes_accessed=bytes_accessed),
    )(x_t, w1_f, b1_col, w2_k, b2_col)

    out_t = out_t if b_pad == B else out_t[:, :B]
    return out_t.T


def init_params(key, n_feature, n_hidden, n_out):
    """PyTorch-Linear-style init, torch layouts: W (out, in), b (out,)."""
    k1, k2, k3, k4 = jax.random.split(key, 4)
    bound1 = 1.0 / (n_feature ** 0.5)
    bound2 = 1.0 / (n_hidden ** 0.5)
    w1 = jax.random.uniform(k1, (n_hidden, n_feature), jnp.float32, -bound1, bound1)
    b1 = jax.random.uniform(k2, (n_hidden,), jnp.float32, -bound1, bound1)
    w2 = jax.random.uniform(k3, (n_out, n_hidden), jnp.float32, -bound2, bound2)
    b2 = jax.random.uniform(k4, (n_out,), jnp.float32, -bound2, bound2)
    return w1, b1, w2, b2


def _ref_forward(x, w1, b1, w2, b2):
    return jnp.maximum(x @ w1.T + b1[None, :], 0.0) @ w2.T + b2[None, :]


if __name__ == "__main__":
    # Shapes implied by the regression script: x = unsqueeze(x, 1) -> (N, 1),
    # i.e. n_feature = 1; small hidden / output widths.
    n_feature, n_hidden, n_out = 1, 32, 1

    key = jax.random.PRNGKey(0)
    kx, kp, kx2 = jax.random.split(key, 3)
    w1, b1, w2, b2 = init_params(kp, n_feature, n_hidden, n_out)

    # 1) Small-B path (single full block, no pad/slice): the actual workload.
    batch = 16
    x = jax.random.normal(kx, (batch, n_feature), dtype=jnp.float32)
    y = net_forward(x, w1, b1, w2, b2)
    jax.block_until_ready(y)
    y_ref = _ref_forward(x, w1, b1, w2, b2)
    assert y.shape == (batch, n_out)
    assert jnp.allclose(y, y_ref, atol=1e-5, rtol=1e-5)

    # 2) Large-B path (VMEM-budget tile, grid >= 2, padded batch).
    batch2 = 400
    x2 = jax.random.normal(kx2, (batch2, n_feature), dtype=jnp.float32)
    y2 = net_forward(x2, w1, b1, w2, b2)
    jax.block_until_ready(y2)
    y2_ref = _ref_forward(x2, w1, b1, w2, b2)
    assert y2.shape == (batch2, n_out)
    assert jnp.allclose(y2, y2_ref, atol=1e-5, rtol=1e-5)

    print("KERNEL_OK")
</pallas_src>

<mosaic_0001>
module attributes {stable_mosaic.version = 11 : i64} {
  func.func @mlp_kernel(%arg0: i32, %arg1: memref<1x16xf32, #tpu.memory_space<vmem>>, %arg2: memref<32x1xf32, #tpu.memory_space<vmem>>, %arg3: memref<32x1xf32, #tpu.memory_space<vmem>>, %arg4: memref<32x1xf32, #tpu.memory_space<vmem>>, %arg5: memref<1x1xf32, #tpu.memory_space<vmem>>, %arg6: memref<1x16xf32, #tpu.memory_space<vmem>>) attributes {dimension_semantics = [#tpu.dimension_semantics<parallel>], iteration_bounds = array<i64: 1>, scalar_prefetch = 0 : i64, scratch_operands = 0 : i64, tpu.core_type = #tpu.core_type<tc>, window_params = [{transform_indices = @transform_0, window_bounds = array<i64: 1, 16>}, {pipeline_mode = #tpu.pipeline_mode<synchronous>, transform_indices = @transform_1, window_bounds = array<i64: 32, 1>}, {pipeline_mode = #tpu.pipeline_mode<synchronous>, transform_indices = @transform_2, window_bounds = array<i64: 32, 1>}, {pipeline_mode = #tpu.pipeline_mode<synchronous>, transform_indices = @transform_3, window_bounds = array<i64: 32, 1>}, {pipeline_mode = #tpu.pipeline_mode<synchronous>, transform_indices = @transform_4, window_bounds = array<i64: 1, 1>}, {transform_indices = @transform_5, window_bounds = array<i64: 1, 16>}]} {
    %c0 = arith.constant 0 : index
    %c0_0 = arith.constant 0 : index
    %0 = vector.load %arg1[%c0, %c0_0] : memref<1x16xf32, #tpu.memory_space<vmem>>, vector<1x16xf32>
    %c0_1 = arith.constant 0 : index
    %c0_2 = arith.constant 0 : index
    %1 = vector.load %arg2[%c0_1, %c0_2] : memref<32x1xf32, #tpu.memory_space<vmem>>, vector<32x1xf32>
    %2 = vector.broadcast %1 : vector<32x1xf32> to vector<32x16xf32>
    %3 = vector.broadcast %0 : vector<1x16xf32> to vector<32x16xf32>
    %4 = arith.mulf %2, %3 : vector<32x16xf32>
    %c0_3 = arith.constant 0 : index
    %c0_4 = arith.constant 0 : index
    %5 = vector.load %arg3[%c0_3, %c0_4] : memref<32x1xf32, #tpu.memory_space<vmem>>, vector<32x1xf32>
    %6 = vector.broadcast %5 : vector<32x1xf32> to vector<32x16xf32>
    %7 = arith.addf %4, %6 : vector<32x16xf32>
    %cst = arith.constant 0.000000e+00 : f32
    %8 = vector.broadcast %cst : f32 to vector<32x16xf32>
    %9 = arith.maximumf %7, %8 : vector<32x16xf32>
    %c0_5 = arith.constant 0 : index
    %c0_6 = arith.constant 0 : index
    %10 = vector.load %arg4[%c0_5, %c0_6] : memref<32x1xf32, #tpu.memory_space<vmem>>, vector<32x1xf32>
    %c0_7 = arith.constant 0 : index
    %c0_8 = arith.constant 0 : index
    %11 = vector.load %arg5[%c0_7, %c0_8] : memref<1x1xf32, #tpu.memory_space<vmem>>, vector<1x1xf32>
    %12 = vector.broadcast %10 : vector<32x1xf32> to vector<32x16xf32>
    %13 = arith.mulf %9, %12 : vector<32x16xf32>
    %cst_9 = arith.constant dense<0.000000e+00> : vector<16xf32>
    %14 = vector.multi_reduction <add>, %13, %cst_9 [0] : vector<32x16xf32> to vector<16xf32>
    %15 = vector.shape_cast %14 : vector<16xf32> to vector<1x16xf32>
    %16 = vector.broadcast %11 : vector<1x1xf32> to vector<1x16xf32>
    %17 = arith.addf %15, %16 : vector<1x16xf32>
    %c0_10 = arith.constant 0 : index
    %c0_11 = arith.constant 0 : index
    %18 = vector.load %arg6[%c0_10, %c0_11] : memref<1x16xf32, #tpu.memory_space<vmem>>, vector<1x16xf32>
    tpu.vector_store %arg6[%c0_10, %c0_11], %17 {strides = array<i32>} : memref<1x16xf32, #tpu.memory_space<vmem>>, vector<1x16xf32>,
    return
  }
  func.func @transform_0(%arg0: i32) -> (i32, i32) {
    %c0_i32 = arith.constant 0 : i32
    %c0_i32_0 = arith.constant 0 : i32
    return %c0_i32, %arg0 : i32, i32
  }
  func.func @transform_1(%arg0: i32) -> (i32, i32) {
    %c0_i32 = arith.constant 0 : i32
    %c0_i32_0 = arith.constant 0 : i32
    %c0_i32_1 = arith.constant 0 : i32
    return %c0_i32, %c0_i32_0 : i32, i32
  }
  func.func @transform_2(%arg0: i32) -> (i32, i32) {
    %c0_i32 = arith.constant 0 : i32
    %c0_i32_0 = arith.constant 0 : i32
    %c0_i32_1 = arith.constant 0 : i32
    return %c0_i32, %c0_i32_0 : i32, i32
  }
  func.func @transform_3(%arg0: i32) -> (i32, i32) {
    %c0_i32 = arith.constant 0 : i32
    %c0_i32_0 = arith.constant 0 : i32
    %c0_i32_1 = arith.constant 0 : i32
    return %c0_i32, %c0_i32_0 : i32, i32
  }
  func.func @transform_4(%arg0: i32) -> (i32, i32) {
    %c0_i32 = arith.constant 0 : i32
    %c0_i32_0 = arith.constant 0 : i32
    %c0_i32_1 = arith.constant 0 : i32
    return %c0_i32, %c0_i32_0 : i32, i32
  }
  func.func @transform_5(%arg0: i32) -> (i32, i32) {
    %c0_i32 = arith.constant 0 : i32
    %c0_i32_0 = arith.constant 0 : i32
    return %c0_i32, %arg0 : i32, i32
  }
}

</mosaic_0001>

<llo_original>
// kernel: net_forward.1
$region0: #{net_forward.1}
  #allocation0 [shape = 'u32[]', space=smem, size = 0x4, offset = 0x4, fixed_abs, tag = 'smem constant byte address 0x4 - core index']
  #allocation1 [shape = 'u32[72,128]{1,0:T(1,128)}', space=vmem, size = 0x9000, scoped, tag = 'internal scratch']
  #allocation2 [shape = 'f32[1,1]{1,0:T(1,128)S(1)}', space=vmem, size = 0x200, scoped, tag = 'scoped memory for net_forward.1']
  %s0 = inlined_call_operand.vmem [shape: f32[1,16], index: 0, kind: input, shape index: {}]
  %s1 = inlined_call_operand.vmem [shape: f32[32,1], index: 1, kind: input, shape index: {}]
  %s2 = inlined_call_operand.vmem [shape: f32[32,1], index: 2, kind: input, shape index: {}]
  %s3 = inlined_call_operand.vmem [shape: f32[32,1], index: 3, kind: input, shape index: {}]
  %s4 = inlined_call_operand.<no memory space> [shape: f32[1,1], index: 4, kind: input, shape index: {}]
  %s5 = inlined_call_operand.hbm [shape: f32[1,16], index: 5, kind: output, shape index: {}]
  %s6 = sld [smem:[#allocation0]]
  $region30: #{net_forward.1} parent=0
    _
  %s8 = ssub.s32 1, %s6
  %s9 = scalar_select 0, %s8, %s6
  %v10 = vstv %s4
  %11 = vst [vmem:[#allocation2] sm:$0x1] %v10
  $region1: #{net_forward.1} parent=0
    #allocation3 [shape = 'u8[512]{0}', space=vmem, size = 0x400, scoped, tag = 'output window, operand 0, single buffered']
    #allocation4 [shape = 's32[1]{0}', space=sflag, size = 0x4, scoped, tag = 'scoped memory for net_forward.1']
    %12 = vsyncpa [#allocation4], 0
    // Predicated region
    $region2: #{net_forward.1} parent=1 // pred_check
      _
    $region3: #{net_forward.1} parent=1 // pred_check_branch
      %14 = sbr.rel (0) target = $region5
    $region4: #{net_forward.1} parent=1 // pred_region
      _
    $region5: #{net_forward.1} parent=1 // pred_fallthru
      _
    // Predicated region
    $region6: #{net_forward.1} parent=1 // pred_check
      _
    $region7: #{net_forward.1} parent=1 // pred_check_branch
      %16 = sbr.rel (0) target = $region9
    $region8: #{net_forward.1} parent=1 // pred_region
      _
    $region9: #{net_forward.1} parent=1 // pred_fallthru
      _
    // Predicated region
    $region10: #{net_forward.1} parent=1 // pred_check
      _
    $region11: #{net_forward.1} parent=1 // pred_check_branch
      %18 = sbr.rel (0) target = $region13
    $region12: #{net_forward.1} parent=1 // pred_region
      _
    $region13: #{net_forward.1} parent=1 // pred_fallthru
      _
    // Predicated region
    $region14: #{net_forward.1} parent=1 // pred_check
      _
    $region15: #{net_forward.1} parent=1 // pred_check_branch
      %20 = sbr.rel (0) target = $region17
    $region16: #{net_forward.1} parent=1 // pred_region
      _
    $region17: #{net_forward.1} parent=1 // pred_fallthru
      _
    // Predicated region
    $region18: #{net_forward.1} parent=1 // pred_check
      _
    $region19: #{net_forward.1} parent=1 // pred_check_branch
      %22 = sbr.rel (0) target = $region21
    $region20: #{net_forward.1} parent=1 // pred_region
      _
    $region21: #{net_forward.1} parent=1 // pred_fallthru
      _
    %v23 = vld [vmem:[%s0] sm:$0x1]
    %v24 = vld [vmem:[%s1] sm:$0xff]
    %v25 = vld [vmem:[%s1 + $0x8] sm:$0xff]
    %v26 = vld [vmem:[%s1 + $0x10] sm:$0xff]
    %v27 = vld [vmem:[%s1 + $0x18] sm:$0xff]
    %29 = vset.pattern.permute.xlu0 0
    %30 = vperm.xlu0 %29, %v24
    %v31 = vpop.permute.xlu0 %30
    %34 = vset.pattern.permute.xlu0 0
    %35 = vperm.xlu0 %34, %v25
    %v36 = vpop.permute.xlu0 %35
    %39 = vset.pattern.permute.xlu0 0
    %40 = vperm.xlu0 %39, %v26
    %v41 = vpop.permute.xlu0 %40
    %44 = vset.pattern.permute.xlu0 0
    %45 = vperm.xlu0 %44, %v27
    %v46 = vpop.permute.xlu0 %45
    %v49 = vperm.slane %v23, 0
    %v51 = vmul.f32 %v31, %v49
    %v52 = vmul.f32 %v36, %v49
    %v53 = vmul.f32 %v41, %v49
    %v54 = vmul.f32 %v46, %v49
    %v55 = vld [vmem:[%s2] sm:$0xff]
    %v56 = vld [vmem:[%s2 + $0x8] sm:$0xff]
    %v57 = vld [vmem:[%s2 + $0x10] sm:$0xff]
    %v58 = vld [vmem:[%s2 + $0x18] sm:$0xff]
    %60 = vset.pattern.permute.xlu0 0
    %61 = vperm.xlu0 %60, %v55
    %v62 = vpop.permute.xlu0 %61
    %65 = vset.pattern.permute.xlu0 0
    %66 = vperm.xlu0 %65, %v56
    %v67 = vpop.permute.xlu0 %66
    %70 = vset.pattern.permute.xlu0 0
    %71 = vperm.xlu0 %70, %v57
    %v72 = vpop.permute.xlu0 %71
    %75 = vset.pattern.permute.xlu0 0
    %76 = vperm.xlu0 %75, %v58
    %v77 = vpop.permute.xlu0 %76
    %v79 = vadd.f32 %v51, %v62
    %v80 = vadd.f32 %v52, %v67
    %v81 = vadd.f32 %v53, %v72
    %v82 = vadd.f32 %v54, %v77
    %v83 = vmax.f32 %v79, 0.0
    %v84 = vmax.f32 %v80, 0.0
    %v85 = vmax.f32 %v81, 0.0
    %v86 = vmax.f32 %v82, 0.0
    %v87 = vld [vmem:[%s3] sm:$0xff]
    %v88 = vld [vmem:[%s3 + $0x8] sm:$0xff]
    %v89 = vld [vmem:[%s3 + $0x10] sm:$0xff]
    %v90 = vld [vmem:[%s3 + $0x18] sm:$0xff]
    %v91 = vld [vmem:[#allocation2] sm:$0x1]
    %93 = vset.pattern.permute.xlu0 0
    %94 = vperm.xlu0 %93, %v87
    %v95 = vpop.permute.xlu0 %94
    %98 = vset.pattern.permute.xlu0 0
    %99 = vperm.xlu0 %98, %v88
    %v100 = vpop.permute.xlu0 %99
    %103 = vset.pattern.permute.xlu0 0
    %104 = vperm.xlu0 %103, %v89
    %v105 = vpop.permute.xlu0 %104
    %108 = vset.pattern.permute.xlu0 0
    %109 = vperm.xlu0 %108, %v90
    %v110 = vpop.permute.xlu0 %109
    %v112 = vmul.f32 %v83, %v95
    %v113 = vmul.f32 %v84, %v100
    %v114 = vmul.f32 %v85, %v105
    %v115 = vmul.f32 %v86, %v110
    %vm116 = vcmask 130048
    %v117 = vsel %vm116, %v112, 0.0
    %v118 = vsel %vm116, %v113, 0.0
    %v119 = vadd.f32 %v117, %v118
    %v120 = vsel %vm116, %v114, 0.0
    %v121 = vadd.f32 %v119, %v120
    %v122 = vsel %vm116, %v115, 0.0
    %v123 = vadd.f32 %v121, %v122
    %v124 = vrot.slane %v123, 4
    %v125 = vadd.f32 %v123, %v124
    %v126 = vrot.slane %v125, 2
    %v127 = vadd.f32 %v125, %v126
    %v128 = vrot.slane %v127, 1
    %v129 = vadd.f32 %v127, %v128
    %131 = vset.pattern.permute.xlu0 0
    %132 = vperm.xlu0 %131, %v91
    %v133 = vpop.permute.xlu0 %132
    %v135 = vperm.slane %v133, 0
    %v136 = vadd.f32 %v129, %v135
    %vm137 = vcmask 122880
    %138 = vst.msk [vmem:[#allocation3] sm:$0x1] %vm137, %v136
    // Predicated region
    $region22: #{net_forward.1} parent=1 // pred_check
      _
    $region23: #{net_forward.1} parent=1 // pred_check_branch
      %140 = sbr.rel (0) target = $region25
    $region24: #{net_forward.1} parent=1 // pred_region
      %142 = vsyncadd [#allocation4], 0
      %s144 = sshll.u32 [#allocation3], 4
      %s145 = int_to_ptr.vmem [resolvable:$true] %s144
      %s146 = sshll.u32 %s5, 4
      %s147 = int_to_ptr.hbm [resolvable:$true] %s146
      %149 = dma.vmem_to_hbm [thread:$0]  %s145, 16, %s147, [#allocation4]
    $region25: #{net_forward.1} parent=1 // pred_fallthru
      _
    // Predicated region
    $region26: #{net_forward.1} parent=1 // pred_check
      _
    $region27: #{net_forward.1} parent=1 // pred_check_branch
      %151 = sbr.rel (0) target = $region29
    $region28: #{net_forward.1} parent=1 // pred_region
      %153 = dma.done [#allocation4], 16
    $region29: #{net_forward.1} parent=1 // pred_fallthru
      _
    %154 = vsyncpa [#allocation4], 1

</llo_original>
